<compile_context>
chip_gen: v5e
topology: v5e:2x2
jax: 0.10.0
libtpu: 0.0.40
codegen_flags: <defaults>
</compile_context>

<pallas_src>
import jax
import jax.numpy as jnp
from jax.experimental import pallas as pl
from jax.experimental.pallas import tpu as pltpu


def _round_up(n, m):
    return ((n + m - 1) // m) * m


def _vmem_capacity_bytes():
    # Generation-aware VMEM size (v5e/v6e: 128 MiB, v7x: 64 MiB per TensorCore).
    try:
        return int(pltpu.get_tpu_info().vmem_capacity_bytes)
    except Exception:
        return 64 * 1024 * 1024  # conservative fallback, safe on every generation


def _neg_pearson_row_kernel(x_ref, y_ref, z_ref):
    """Whole-row tile (tk == T): two-pass centered math (best numerics)."""
    x = x_ref[...].astype(jnp.float32)
    y = y_ref[...].astype(jnp.float32)
    t = x.shape[1]
    inv_t = 1.0 / t

    mx = jnp.sum(x, axis=1, keepdims=True) * inv_t
    my = jnp.sum(y, axis=1, keepdims=True) * inv_t
    xc = x - mx
    yc = y - my

    sxx = jnp.sum(xc * xc, axis=1, keepdims=True)
    syy = jnp.sum(yc * yc, axis=1, keepdims=True)
    sxy = jnp.sum(xc * yc, axis=1, keepdims=True)

    # Exact algebra of the PyTorch expression: cross terms vanish (centered rows
    # have zero mean), torch.std is unbiased -> (T-1)/T factor, +1e-5*1e-5 const.
    scale = (t - 1.0) * inv_t
    z_ref[...] = sxy * jax.lax.rsqrt(sxx * syy) * scale + 1e-10


def _make_tiled_kernel(t_total, tk, ragged_t):
    """Long-T path: accumulate raw moments over the T grid axis into scratch.

    Raw-moment (single-pass) math is slightly less robust than the centered
    two-pass version for inputs with |mean| >> std, but accumulation is f32 and
    rPPG-style signals are well scaled; the streaming form is required here.
    """
    inv_t = 1.0 / t_total
    scale = (t_total - 1.0) * inv_t

    def kernel(x_ref, y_ref, z_ref, sx, sy, sxx, syy, sxy):
        k = pl.program_id(1)

        @pl.when(k == 0)
        def _():
            sx[...] = jnp.zeros_like(sx)
            sy[...] = jnp.zeros_like(sy)
            sxx[...] = jnp.zeros_like(sxx)
            syy[...] = jnp.zeros_like(syy)
            sxy[...] = jnp.zeros_like(sxy)

        x = x_ref[...].astype(jnp.float32)
        y = y_ref[...].astype(jnp.float32)
        if ragged_t:
            # Mask the garbage lanes of the ragged last T block.
            col = k * tk + jax.lax.broadcasted_iota(jnp.int32, x.shape, 1)
            valid = col < t_total
            x = jnp.where(valid, x, 0.0)
            y = jnp.where(valid, y, 0.0)

        sx[...] += jnp.sum(x, axis=1, keepdims=True)
        sy[...] += jnp.sum(y, axis=1, keepdims=True)
        sxx[...] += jnp.sum(x * x, axis=1, keepdims=True)
        syy[...] += jnp.sum(y * y, axis=1, keepdims=True)
        sxy[...] += jnp.sum(x * y, axis=1, keepdims=True)

        @pl.when(k == pl.num_programs(1) - 1)
        def _():
            mx = sx[...] * inv_t
            my = sy[...] * inv_t
            vxx = sxx[...] - t_total * mx * mx
            vyy = syy[...] - t_total * my * my
            vxy = sxy[...] - t_total * mx * my
            z_ref[...] = vxy * jax.lax.rsqrt(vxx * vyy) * scale + 1e-10

    return kernel


def _pick_tiles(b, t, itemsize, force_tk=None):
    vmem_cap = _vmem_capacity_bytes()
    # Sublane multiple for the input dtype (f32: 8, bf16: 16, int8/fp8: 32).
    sub = max(8, 32 // itemsize)
    # Working-set budget per grid step: 2 inputs x 2 pipeline buffers of the
    # input tile plus ~2 f32-tile temporaries, sized to ~3/8 of this
    # generation's VMEM (v5e/v6e: ~48 MiB, v7x: ~24 MiB).
    budget = (vmem_cap * 3) // 8
    per_elem = 4 * itemsize + 8  # bytes of working set per tile element
    b_pad = _round_up(b, sub)
    t_pad = _round_up(t, 128)

    if force_tk is not None:
        tk = min(_round_up(force_tk, 128), t_pad)
        if tk >= t:
            tk = t
    elif sub * t * per_elem <= budget:
        tk = t
    else:
        tk = 0  # long-T: derived below

    if tk == t:
        tb = budget // max(1, t * per_elem)
    else:
        # T axis gets tiled: keep a moderately tall row tile for DMA granularity
        # and spend the rest of the budget on the lane dimension.
        tb = min(b_pad, 8 * sub)
        if tk == 0:
            tk = ((budget // (tb * per_elem)) // 128) * 128
            tk = max(128, min(tk, t_pad))

    tb = (tb // sub) * sub
    tb = max(sub, min(tb, 4096, b_pad))
    # v7x megacore: keep >= ~4 batch tiles (when the batch allows it) so the
    # "parallel" axis can be sharded across both TensorCores.  Harmless on
    # single-TC v5e/v6e (a few extra ~0.35us grid steps).
    tb = min(tb, max(sub, _round_up(pl.cdiv(b, 4), sub)))

    vmem_limit = (vmem_cap * 3) // 4
    return tb, tk, vmem_limit


def neg_pearson_loss(x, y, *, _force_tk=None):
    """x, y: (B, T) arrays. Returns the scalar Neg-Pearson loss (float32)."""
    assert x.shape == y.shape and x.ndim == 2
    # TODO(synk): torch's `assert not torch.any(torch.isnan(...))` input checks
    # are not replicated in-kernel.
    b, t = x.shape
    itemsize = x.dtype.itemsize
    tb, tk, vmem_limit = _pick_tiles(b, t, itemsize, _force_tk)
    grid_b = pl.cdiv(b, tb)
    num_k = pl.cdiv(t, tk)

    cost = pl.CostEstimate(
        flops=10 * b * t,
        transcendentals=b,
        bytes_accessed=2 * b * t * itemsize + 4 * b,
    )

    if num_k == 1:
        z = pl.pallas_call(
            _neg_pearson_row_kernel,
            out_shape=jax.ShapeDtypeStruct((b, 1), jnp.float32),
            grid=(grid_b,),
            in_specs=[
                pl.BlockSpec((tb, t), lambda i: (i, 0)),
                pl.BlockSpec((tb, t), lambda i: (i, 0)),
            ],
            out_specs=pl.BlockSpec((tb, 1), lambda i: (i, 0)),
            compiler_params=pltpu.CompilerParams(
                dimension_semantics=("parallel",),
                vmem_limit_bytes=vmem_limit,
            ),
            cost_estimate=cost,
        )(x, y)
    else:
        ragged_t = (t % tk) != 0
        kernel = _make_tiled_kernel(t, tk, ragged_t)
        z = pl.pallas_call(
            kernel,
            out_shape=jax.ShapeDtypeStruct((b, 1), jnp.float32),
            grid=(grid_b, num_k),
            in_specs=[
                pl.BlockSpec((tb, tk), lambda i, k: (i, k)),
                pl.BlockSpec((tb, tk), lambda i, k: (i, k)),
            ],
            out_specs=pl.BlockSpec((tb, 1), lambda i, k: (i, 0)),
            scratch_shapes=[pltpu.VMEM((tb, 1), jnp.float32)] * 5,
            compiler_params=pltpu.CompilerParams(
                dimension_semantics=("parallel", "arbitrary"),
                vmem_limit_bytes=vmem_limit,
            ),
            cost_estimate=cost,
        )(x, y)

    # Out-of-bounds rows of ragged edge blocks are never stored, so z holds
    # exactly B valid rows -- no slicing or masking needed.
    return 1.0 - jnp.mean(z[:, 0])


if __name__ == "__main__":
    # Pure-JAX reference (literal PyTorch expression: unbiased std, +1e-5 on ratio).
    def ref(X, Y):
        X = X - X.mean(1)[:, None]
        Y = Y - Y.mean(1)[:, None]
        Xs = jnp.sqrt(jnp.sum(X * X, axis=1) / (X.shape[1] - 1))
        Ys = jnp.sqrt(jnp.sum(Y * Y, axis=1) / (Y.shape[1] - 1))
        X = X / Xs[:, None] + 1e-05
        Y = Y / Ys[:, None] + 1e-05
        Z = (X * Y).mean(1)
        return 1.0 - Z.mean()

    key = jax.random.PRNGKey(0)

    # case 1: lane-aligned T, single batch tile
    k1, k2, key = jax.random.split(key, 3)
    x1 = jax.random.normal(k1, (8, 128), dtype=jnp.float32)
    y1 = 0.7 * x1 + 0.3 * jax.random.normal(k2, (8, 128), dtype=jnp.float32)
    l1 = neg_pearson_loss(x1, y1)
    jax.block_until_ready(l1)
    assert jnp.allclose(l1, ref(x1, y1), atol=1e-5, rtol=1e-5), (l1, ref(x1, y1))

    # case 2: batch not a multiple of the row tile (ragged edge block, no padding)
    k3, k4, key = jax.random.split(key, 3)
    x2 = jax.random.normal(k3, (12, 256), dtype=jnp.float32)
    y2 = 0.5 * x2 + 0.5 * jax.random.normal(k4, (12, 256), dtype=jnp.float32)
    l2 = neg_pearson_loss(x2, y2)
    jax.block_until_ready(l2)
    assert jnp.allclose(l2, ref(x2, y2), atol=1e-5, rtol=1e-5), (l2, ref(x2, y2))

    # case 3: long-T path (T-axis grid + moment scratch), T divisible by tk
    k5, k6, key = jax.random.split(key, 3)
    x3 = jax.random.normal(k5, (16, 384), dtype=jnp.float32)
    y3 = 0.6 * x3 + 0.4 * jax.random.normal(k6, (16, 384), dtype=jnp.float32)
    l3 = neg_pearson_loss(x3, y3, _force_tk=128)
    jax.block_until_ready(l3)
    assert jnp.allclose(l3, ref(x3, y3), atol=1e-4, rtol=1e-4), (l3, ref(x3, y3))

    # case 4: long-T path with ragged T block AND ragged batch block
    k7, k8, key = jax.random.split(key, 3)
    x4 = jax.random.normal(k7, (10, 320), dtype=jnp.float32)
    y4 = 0.3 * x4 + 0.7 * jax.random.normal(k8, (10, 320), dtype=jnp.float32)
    l4 = neg_pearson_loss(x4, y4, _force_tk=128)
    jax.block_until_ready(l4)
    assert jnp.allclose(l4, ref(x4, y4), atol=1e-4, rtol=1e-4), (l4, ref(x4, y4))

    # case 5: bf16 inputs (dtype-aware 16-row sublane tiling)
    k9, k10, key = jax.random.split(key, 3)
    x5 = jax.random.normal(k9, (32, 256), dtype=jnp.float32).astype(jnp.bfloat16)
    y5 = (0.5 * x5.astype(jnp.float32)
          + 0.5 * jax.random.normal(k10, (32, 256), dtype=jnp.float32)).astype(jnp.bfloat16)
    l5 = neg_pearson_loss(x5, y5)
    jax.block_until_ready(l5)
    r5 = ref(x5.astype(jnp.float32), y5.astype(jnp.float32))
    assert jnp.allclose(l5, r5, atol=1e-4, rtol=1e-4), (l5, r5)

    print("KERNEL_OK")
</pallas_src>

<mosaic_0001>
module attributes {stable_mosaic.version = 11 : i64} {
  func.func @_neg_pearson_row_kernel(%arg0: i32, %arg1: memref<8x128xf32, #tpu.memory_space<vmem>>, %arg2: memref<8x128xf32, #tpu.memory_space<vmem>>, %arg3: memref<8x1xf32, #tpu.memory_space<vmem>>) attributes {dimension_semantics = [#tpu.dimension_semantics<parallel>], iteration_bounds = array<i64: 1>, scalar_prefetch = 0 : i64, scratch_operands = 0 : i64, tpu.core_type = #tpu.core_type<tc>, window_params = [{transform_indices = @transform_0, window_bounds = array<i64: 8, 128>}, {transform_indices = @transform_1, window_bounds = array<i64: 8, 128>}, {transform_indices = @transform_2, window_bounds = array<i64: 8, 1>}]} {
    %c0 = arith.constant 0 : index
    %c0_0 = arith.constant 0 : index
    %0 = vector.load %arg1[%c0, %c0_0] : memref<8x128xf32, #tpu.memory_space<vmem>>, vector<8x128xf32>
    %c0_1 = arith.constant 0 : index
    %c0_2 = arith.constant 0 : index
    %1 = vector.load %arg2[%c0_1, %c0_2] : memref<8x128xf32, #tpu.memory_space<vmem>>, vector<8x128xf32>
    %cst = arith.constant dense<0.000000e+00> : vector<8xf32>
    %2 = vector.multi_reduction <add>, %0, %cst [1] : vector<8x128xf32> to vector<8xf32>
    %3 = vector.shape_cast %2 : vector<8xf32> to vector<8x1xf32>
    %cst_3 = arith.constant 7.812500e-03 : f32
    %4 = vector.broadcast %cst_3 : f32 to vector<8x1xf32>
    %5 = arith.mulf %3, %4 : vector<8x1xf32>
    %cst_4 = arith.constant dense<0.000000e+00> : vector<8xf32>
    %6 = vector.multi_reduction <add>, %1, %cst_4 [1] : vector<8x128xf32> to vector<8xf32>
    %7 = vector.shape_cast %6 : vector<8xf32> to vector<8x1xf32>
    %cst_5 = arith.constant 7.812500e-03 : f32
    %8 = vector.broadcast %cst_5 : f32 to vector<8x1xf32>
    %9 = arith.mulf %7, %8 : vector<8x1xf32>
    %10 = vector.broadcast %5 : vector<8x1xf32> to vector<8x128xf32>
    %11 = arith.subf %0, %10 : vector<8x128xf32>
    %12 = vector.broadcast %9 : vector<8x1xf32> to vector<8x128xf32>
    %13 = arith.subf %1, %12 : vector<8x128xf32>
    %14 = arith.mulf %11, %11 : vector<8x128xf32>
    %cst_6 = arith.constant dense<0.000000e+00> : vector<8xf32>
    %15 = vector.multi_reduction <add>, %14, %cst_6 [1] : vector<8x128xf32> to vector<8xf32>
    %16 = vector.shape_cast %15 : vector<8xf32> to vector<8x1xf32>
    %17 = arith.mulf %13, %13 : vector<8x128xf32>
    %cst_7 = arith.constant dense<0.000000e+00> : vector<8xf32>
    %18 = vector.multi_reduction <add>, %17, %cst_7 [1] : vector<8x128xf32> to vector<8xf32>
    %19 = vector.shape_cast %18 : vector<8xf32> to vector<8x1xf32>
    %20 = arith.mulf %11, %13 : vector<8x128xf32>
    %cst_8 = arith.constant dense<0.000000e+00> : vector<8xf32>
    %21 = vector.multi_reduction <add>, %20, %cst_8 [1] : vector<8x128xf32> to vector<8xf32>
    %22 = vector.shape_cast %21 : vector<8xf32> to vector<8x1xf32>
    %23 = arith.mulf %16, %19 : vector<8x1xf32>
    %24 = math.rsqrt %23 : vector<8x1xf32>
    %25 = arith.mulf %22, %24 : vector<8x1xf32>
    %cst_9 = arith.constant 0.9921875 : f32
    %26 = vector.broadcast %cst_9 : f32 to vector<8x1xf32>
    %27 = arith.mulf %25, %26 : vector<8x1xf32>
    %cst_10 = arith.constant 1.000000e-10 : f32
    %28 = vector.broadcast %cst_10 : f32 to vector<8x1xf32>
    %29 = arith.addf %27, %28 : vector<8x1xf32>
    %c0_11 = arith.constant 0 : index
    %c0_12 = arith.constant 0 : index
    %30 = vector.load %arg3[%c0_11, %c0_12] : memref<8x1xf32, #tpu.memory_space<vmem>>, vector<8x1xf32>
    tpu.vector_store %arg3[%c0_11, %c0_12], %29 {strides = array<i32>} : memref<8x1xf32, #tpu.memory_space<vmem>>, vector<8x1xf32>,
    return
  }
  func.func @transform_0(%arg0: i32) -> (i32, i32) {
    %c0_i32 = arith.constant 0 : i32
    %c0_i32_0 = arith.constant 0 : i32
    return %arg0, %c0_i32 : i32, i32
  }
  func.func @transform_1(%arg0: i32) -> (i32, i32) {
    %c0_i32 = arith.constant 0 : i32
    %c0_i32_0 = arith.constant 0 : i32
    return %arg0, %c0_i32 : i32, i32
  }
  func.func @transform_2(%arg0: i32) -> (i32, i32) {
    %c0_i32 = arith.constant 0 : i32
    %c0_i32_0 = arith.constant 0 : i32
    return %arg0, %c0_i32 : i32, i32
  }
}

</mosaic_0001>

<llo_original>
// kernel: tpu_custom_call.1
$region0: #{tpu_custom_call.1}
  #allocation0 [shape = 'u32[]', space=smem, size = 0x4, offset = 0x4, fixed_abs, tag = 'smem constant byte address 0x4 - core index']
  #allocation1 [shape = 'u32[72,128]{1,0:T(1,128)}', space=vmem, size = 0x9000, scoped, tag = 'internal scratch']
  %s0 = inlined_call_operand.hbm [shape: f32[8,128], index: 0, kind: input, shape index: {}]
  %s1 = inlined_call_operand.hbm [shape: f32[8,128], index: 1, kind: input, shape index: {}]
  %s2 = inlined_call_operand.vmem [shape: f32[8,1], index: 2, kind: output, shape index: {}]
  %s3 = sld [smem:[#allocation0]]
  $region26: #{tpu_custom_call.1} parent=0
    _
  %s5 = ssub.s32 1, %s3
  %s6 = scalar_select 0, %s5, %s3
  $region1: #{tpu_custom_call.1} parent=0
    #allocation2 [shape = 'u8[4096]{0}', space=vmem, size = 0x1000, scoped, tag = 'input window, operand 0, single buffered']
    #allocation3 [shape = 's32[1]{0}', space=sflag, size = 0x4, scoped, tag = 'scoped memory for tpu_custom_call.1']
    #allocation4 [shape = 'u8[4096]{0}', space=vmem, size = 0x1000, scoped, tag = 'input window, operand 1, single buffered']
    #allocation5 [shape = 's32[1]{0}', space=sflag, size = 0x4, scoped, tag = 'scoped memory for tpu_custom_call.1']
    %7 = vsyncpa [#allocation3], 0
    %8 = vsyncpa [#allocation5], 0
    // Predicated region
    $region2: #{tpu_custom_call.1} parent=1 // pred_check
      _
    $region3: #{tpu_custom_call.1} parent=1 // pred_check_branch
      %10 = sbr.rel (0) target = $region5
    $region4: #{tpu_custom_call.1} parent=1 // pred_region
      %12 = vsyncadd [#allocation3], 0
      %s14 = sshll.u32 %s0, 4
      %s15 = int_to_ptr.hbm [resolvable:$true] %s14
      %s16 = sshll.u32 [#allocation2], 4
      %s17 = int_to_ptr.vmem [resolvable:$true] %s16
      %19 = dma.hbm_to_vmem [thread:$0]  %s15, 128, %s17, [#allocation3]
    $region5: #{tpu_custom_call.1} parent=1 // pred_fallthru
      _
    // Predicated region
    $region6: #{tpu_custom_call.1} parent=1 // pred_check
      _
    $region7: #{tpu_custom_call.1} parent=1 // pred_check_branch
      %21 = sbr.rel (0) target = $region9
    $region8: #{tpu_custom_call.1} parent=1 // pred_region
      %23 = vsyncadd [#allocation5], 0
      %s25 = sshll.u32 %s1, 4
      %s26 = int_to_ptr.hbm [resolvable:$true] %s25
      %s27 = sshll.u32 [#allocation4], 4
      %s28 = int_to_ptr.vmem [resolvable:$true] %s27
      %30 = dma.hbm_to_vmem [thread:$0]  %s26, 128, %s28, [#allocation5]
    $region9: #{tpu_custom_call.1} parent=1 // pred_fallthru
      _
    // Predicated region
    $region10: #{tpu_custom_call.1} parent=1 // pred_check
      _
    $region11: #{tpu_custom_call.1} parent=1 // pred_check_branch
      %32 = sbr.rel (0) target = $region13
    $region12: #{tpu_custom_call.1} parent=1 // pred_region
      %34 = dma.done [#allocation3], 128
    $region13: #{tpu_custom_call.1} parent=1 // pred_fallthru
      _
    // Predicated region
    $region14: #{tpu_custom_call.1} parent=1 // pred_check
      _
    $region15: #{tpu_custom_call.1} parent=1 // pred_check_branch
      %36 = sbr.rel (0) target = $region17
    $region16: #{tpu_custom_call.1} parent=1 // pred_region
      %38 = dma.done [#allocation5], 128
    $region17: #{tpu_custom_call.1} parent=1 // pred_fallthru
      _
    %v39 = vld [vmem:[#allocation2] sm:$0xff]
    %v40 = vld [vmem:[#allocation4] sm:$0xff]
    %41 = vadd.xlane.f32.xlu0 %v39
    %v42 = vpop.xlane.xlu0 %41
    %v43 = vmul.f32 %v42, 0.0078125
    %44 = vadd.xlane.f32.xlu0 %v40
    %v45 = vpop.xlane.xlu0 %44
    %v46 = vmul.f32 %v45, 0.0078125
    %v47 = vsub.f32 %v39, %v43
    %v48 = vsub.f32 %v40, %v46
    %v49 = vmul.f32 %v47, %v47
    %50 = vadd.xlane.f32.xlu0 %v49
    %v51 = vpop.xlane.xlu0 %50
    %v52 = vmul.f32 %v48, %v48
    %53 = vadd.xlane.f32.xlu0 %v52
    %v54 = vpop.xlane.xlu0 %53
    %v55 = vmul.f32 %v47, %v48
    %56 = vadd.xlane.f32.xlu0 %v55
    %v57 = vpop.xlane.xlu0 %56
    %v58 = vmul.f32 %v51, %v54
    %v59 = vrsqrt.pop %v58
    %v60 = vmul.f32 %v59, %v58
    %v61 = vmul.f32 %v60, %v59
    %v62 = vmul.f32 0.5, %v61
    %v63 = vsub.f32 1.5, %v62
    %v64 = vmul.f32 %v59, %v63
    %vm65 = vweird.f32 %v58
    %vm66 = vweird.f32 %v59
    %vm67 = vmor %vm65, %vm66
    %v68 = vsel %vm67, %v59, %v64
    %v69 = vmul.f32 %v57, %v68
    %v70 = vmul.f32 %v69, 0.9921875
    %v71 = vadd.f32 %v70, 1e-10
    %vm72 = vcmask 7168
    %73 = vst.msk [vmem:[%s2] sm:$0xff] %vm72, %v71
    // Predicated region
    $region18: #{tpu_custom_call.1} parent=1 // pred_check
      _
    $region19: #{tpu_custom_call.1} parent=1 // pred_check_branch
      %75 = sbr.rel (0) target = $region21
    $region20: #{tpu_custom_call.1} parent=1 // pred_region
      _
    $region21: #{tpu_custom_call.1} parent=1 // pred_fallthru
      _
    // Predicated region
    $region22: #{tpu_custom_call.1} parent=1 // pred_check
      _
    $region23: #{tpu_custom_call.1} parent=1 // pred_check_branch
      %77 = sbr.rel (0) target = $region25
    $region24: #{tpu_custom_call.1} parent=1 // pred_region
      _
    $region25: #{tpu_custom_call.1} parent=1 // pred_fallthru
      _
    %78 = vsyncpa [#allocation3], 1
    %79 = vsyncpa [#allocation5], 1

</llo_original>
